<compile_context>
chip_gen: v5e
topology: v5e:2x2
jax: 0.10.0
libtpu: 0.0.40
codegen_flags: <defaults>
</compile_context>

<pallas_src>
import functools

import jax
import jax.numpy as jnp
from jax.experimental import pallas as pl
from jax.experimental.pallas import tpu as pltpu

NEG_SLOPE = 0.01   # nn.LeakyReLU default
BN_EPS = 1e-5      # nn.BatchNorm1d default

# VMEM sizing (review items 6-8): these are v7x-safe (64 MiB physical per TC).
# On v5e/v6e (128 MiB physical) both could be raised (e.g. budget ~80 MiB,
# limit ~96 MiB) for even larger tiles.
_VMEM_BUDGET_BYTES = 36 * 1024 * 1024
_VMEM_LIMIT_BYTES = 48 * 1024 * 1024
_MAX_ROWS = 8192


def _residual_block_kernel(x_ref, w1s_ref, w2_ref, w3_ref, bias2_ref,
                           o_ref, pool_scr, *, seq_len):
    # x_ref:     (B*L, Cin)       bf16 flattened rows of B batch elements
    # w1s_ref:   (3*Cin, 2*Cout)  bf16 fused [conv1 | shortcut] weights, tap-major
    # w2_ref:    (3*Cout, Cout)   bf16 conv2 weights with eval BN scale folded in
    # w3_ref:    (3*Cout, Cout)   bf16
    # bias2_ref: (1, Cout)        f32 folded BN bias (beta - mean*scale)
    # o_ref:     (B*L//2, Cout)   f32
    # pool_scr:  VMEM (B*L, Cout) f32 scratch for the strided even-row pick
    BL = x_ref.shape[0]
    half = BL // 2
    cin = x_ref.shape[1]
    cout = w2_ref.shape[1]

    # Halo masks generated in-kernel (review item 10): zero padding at each
    # batch element's first/last row, no leakage across element boundaries.
    # Lane-broadcasts hoisted so they happen once per grid step.
    pos = jax.lax.broadcasted_iota(jnp.int32, (BL, 1), 0) % seq_len
    kf = (pos != 0).astype(jnp.float32)                 # kill wrapped a[l-1] at l == 0
    kl = (pos != seq_len - 1).astype(jnp.float32)       # kill wrapped a[l+1] at l == L-1
    kf_in = jnp.broadcast_to(kf, (BL, cin))
    kl_in = jnp.broadcast_to(kl, (BL, cin))
    kf_out = jnp.broadcast_to(kf, (BL, cout))
    kl_out = jnp.broadcast_to(kl, (BL, cout))

    def leaky(a):
        return jnp.where(a >= 0, a, NEG_SLOPE * a)

    def conv3(a, w_ref, kf_c, kl_c):
        # 'same' K=3 conv as MXU matmul(s).  Neighbour views via XLU sublane
        # rolls in f32 (cheap, avoids packed-sublane rolls); operands cast to
        # bf16 only for the MXU, accumulation stays f32.
        c = a.shape[1]
        a_m1 = pltpu.roll(a, 1, axis=0) * kf_c           # a[l-1]
        a_p1 = pltpu.roll(a, BL - 1, axis=0) * kl_c      # a[l+1]
        if c % 128 == 0:
            # Per-tap accumulating matmuls: skip the (BL, 3C) concat copy
            # (review item 3) — K=c already fills the MXU depth.
            w = w_ref[...]
            acc = jnp.dot(a_m1.astype(jnp.bfloat16), w[0:c, :],
                          preferred_element_type=jnp.float32)
            acc += jnp.dot(a.astype(jnp.bfloat16), w[c:2 * c, :],
                           preferred_element_type=jnp.float32)
            acc += jnp.dot(a_p1.astype(jnp.bfloat16), w[2 * c:3 * c, :],
                           preferred_element_type=jnp.float32)
            return acc
        # Small C: lane-stack taps to a (BL, 3C) operand -> one matmul.
        xs = jnp.concatenate([a_m1.astype(jnp.bfloat16),
                              a.astype(jnp.bfloat16),
                              a_p1.astype(jnp.bfloat16)], axis=1)
        return jnp.dot(xs, w_ref[...], preferred_element_type=jnp.float32)

    x = x_ref[...].astype(jnp.float32)                   # (BL, Cin)

    # conv1 and shortcut conv share x -> one fused matmul, split by lane slice.
    y = conv3(x, w1s_ref, kf_in, kl_in)                  # (BL, 2*Cout) f32
    h = leaky(y[:, :cout])                               # conv1 + LeakyReLU (+ dropout=id)
    res = y[:, cout:]                                    # shortcut conv

    h = leaky(conv3(h, w2_ref, kf_out, kl_out) + bias2_ref[...])   # conv2 + folded eval-BN + act
    h = leaky(conv3(h, w3_ref, kf_out, kl_out))                    # conv3 + act

    def pairmax(a):
        # max(a[i], a[i+1]); the wrap-around row only lands on discarded odd rows.
        return jnp.maximum(a, pltpu.roll(a, BL - 1, axis=0))

    # Single pooling pass (review item 4): pool both branches, add, activate at
    # full length, one scratch store + one strided even-row pick.
    pool_scr[...] = leaky(pairmax(h) + pairmax(res))
    o_ref[...] = pool_scr[pl.ds(0, half, 2), :]


def _block_vmem_bytes(rows, cin, cout):
    """Rough per-grid-step VMEM footprint (double-buffered blocks + live temps)."""
    bf16, f32 = 2, 4
    x_blk = 2 * rows * cin * bf16                        # double-buffered input block
    out_blk = 2 * (rows // 2) * cout * f32               # double-buffered output block
    scratch = rows * cout * f32                          # pool_scr
    live = (rows * 3 * max(cin, cout) * bf16             # lane-stacked matmul operand
            + rows * (cin + 3 * cout) * f32              # x (f32) + rolled/masked taps
            + rows * 2 * cout * f32                      # fused conv1|shortcut result
            + 4 * rows * cout * f32                      # h / res / pair-max temporaries
            + 2 * rows * (cin + cout) * f32)             # broadcast halo masks
    return x_blk + out_blk + scratch + live


def _pick_batch_tile(n, length, cin, cout):
    """Largest divisor B of n with aligned (B*L, B*L//2) rows, a per-block VMEM
    footprint under budget, and >= 2 grid steps when n > 1 (v7x dual-TC)."""
    half = max(length // 2, 1)
    best = None
    for b in range(1, n + 1):
        if n % b:
            continue
        rows = b * length
        if rows % 16 or (b * half) % 8:                  # bf16 input / f32 output sublane alignment
            continue
        if rows > _MAX_ROWS or _block_vmem_bytes(rows, cin, cout) > _VMEM_BUDGET_BYTES:
            continue
        if n > 1 and n // b < 2:                         # keep both v7x TensorCores busy
            continue
        best = b
    if best is None:
        # Full-array block is always layout-legal.  For very large N*L this can
        # exceed the VMEM budget; documented limitation of the fallback.
        best = n
    return best


def residual_block(x_ncl, w1, w2, w3, ws, gamma, beta, mean, var):
    """x_ncl: (N, Cin, L); conv weights in PyTorch layout (Cout, Cin_k, 3). Eval mode."""
    N, Cin, L = x_ncl.shape
    Cout = w1.shape[0]
    assert L % 2 == 0, "MaxPool1d(2,2) path assumes even L"  # TODO(synk): odd-L (floor) not handled
    L2 = L // 2
    B = _pick_batch_tile(N, L, Cin, Cout)

    # (N, Cin, L) -> (N, L, Cin) -> (N*L, Cin): channel axis lane-dense; cast to
    # bf16 before the transpose so the extra HBM pass is half-width.
    x_rows = jnp.transpose(x_ncl.astype(jnp.bfloat16), (0, 2, 1)).reshape(N * L, Cin)

    def tap_major_flat(w):   # (Cout, Cin_k, 3) -> (3*Cin_k, Cout), taps stacked along K
        co, ci, k = w.shape
        return jnp.transpose(w, (2, 1, 0)).reshape(k * ci, co).astype(jnp.float32)

    # Fused conv1 | shortcut (both read x).
    w1s = jnp.concatenate([tap_major_flat(w1), tap_major_flat(ws)],
                          axis=1).astype(jnp.bfloat16)                     # (3*Cin, 2*Cout)

    # Fold eval-mode BatchNorm1d into conv2: y -> y*scale + (beta - mean*scale).
    scale = (gamma * jax.lax.rsqrt(var + BN_EPS)).astype(jnp.float32)
    w2f = (tap_major_flat(w2) * scale[None, :]).astype(jnp.bfloat16)       # (3*Cout, Cout)
    bias2 = (beta - mean * scale).reshape(1, Cout).astype(jnp.float32)
    w3f = tap_major_flat(w3).astype(jnp.bfloat16)                          # (3*Cout, Cout)

    kernel = functools.partial(_residual_block_kernel, seq_len=L)

    out_rows = pl.pallas_call(
        kernel,
        out_shape=jax.ShapeDtypeStruct((N * L2, Cout), jnp.float32),
        grid_spec=pltpu.PrefetchScalarGridSpec(
            num_scalar_prefetch=0,
            grid=(N // B,),
            in_specs=[
                pl.BlockSpec((B * L, Cin), lambda n: (n, 0)),           # x rows (bf16)
                pl.BlockSpec((3 * Cin, 2 * Cout), lambda n: (0, 0)),    # fused conv1|shortcut
                pl.BlockSpec((3 * Cout, Cout), lambda n: (0, 0)),       # conv2 (BN folded)
                pl.BlockSpec((3 * Cout, Cout), lambda n: (0, 0)),       # conv3
                pl.BlockSpec((1, Cout), lambda n: (0, 0)),              # folded BN bias
            ],
            out_specs=pl.BlockSpec((B * L2, Cout), lambda n: (n, 0)),
            scratch_shapes=[pltpu.VMEM((B * L, Cout), jnp.float32)],
        ),
        compiler_params=pltpu.CompilerParams(
            dimension_semantics=("parallel",),      # batch tiles independent (v7x dual-TC)
            vmem_limit_bytes=_VMEM_LIMIT_BYTES,     # v7x-safe; see constants above
        ),
    )(x_rows, w1s, w2f, w3f, bias2)

    return jnp.transpose(out_rows.reshape(N, L2, Cout), (0, 2, 1))  # (N, Cout, L//2)


def _reference_forward(x, w1, w2, w3, ws, gamma, beta, mean, var):
    """Pure-JAX f32 reference (PyTorch NCL semantics, eval mode, un-folded BN)."""
    def conv(a, w):
        L = a.shape[2]
        ap = jnp.pad(a, ((0, 0), (0, 0), (1, 1)))
        return sum(jnp.einsum('ncl,oc->nol', ap[:, :, k:k + L], w[:, :, k])
                   for k in range(3))

    def leaky(a):
        return jnp.where(a >= 0, a, NEG_SLOPE * a)

    def pool(a):
        N, C, L = a.shape
        return a.reshape(N, C, L // 2, 2).max(axis=-1)

    out = leaky(conv(x, w1))
    out = conv(out, w2)
    out = ((out - mean[None, :, None]) * jax.lax.rsqrt(var[None, :, None] + BN_EPS)
           * gamma[None, :, None] + beta[None, :, None])
    out = leaky(out)
    out = leaky(conv(out, w3))
    out = pool(out)
    res = pool(conv(x, ws))
    return leaky(out + res)


if __name__ == "__main__":
    key = jax.random.PRNGKey(0)
    N, Cin, Cout, L = 2, 4, 8, 16
    ks = jax.random.split(key, 9)

    def bf16_round(a):
        # Quantize test inputs to bf16-representable values so the bf16-MXU
        # kernel and the f32 reference see identical operands; remaining error
        # comes only from intermediate bf16 activation rounding in the kernel.
        return a.astype(jnp.bfloat16).astype(jnp.float32)

    x = bf16_round(jax.random.normal(ks[0], (N, Cin, L), jnp.float32))
    w1 = bf16_round(0.2 * jax.random.normal(ks[1], (Cout, Cin, 3), jnp.float32))
    w2 = bf16_round(0.2 * jax.random.normal(ks[2], (Cout, Cout, 3), jnp.float32))
    w3 = bf16_round(0.2 * jax.random.normal(ks[3], (Cout, Cout, 3), jnp.float32))
    ws = bf16_round(0.2 * jax.random.normal(ks[4], (Cout, Cin, 3), jnp.float32))
    gamma = 1.0 + 0.1 * jax.random.normal(ks[5], (Cout,), jnp.float32)
    beta = 0.1 * jax.random.normal(ks[6], (Cout,), jnp.float32)
    mean = 0.1 * jax.random.normal(ks[7], (Cout,), jnp.float32)
    var = 1.0 + 0.1 * jax.random.uniform(ks[8], (Cout,), jnp.float32)

    out = residual_block(x, w1, w2, w3, ws, gamma, beta, mean, var)
    out = jax.block_until_ready(out)

    ref = _reference_forward(x, w1, w2, w3, ws, gamma, beta, mean, var)
    assert out.shape == (N, Cout, L // 2), out.shape
    max_err = float(jnp.max(jnp.abs(out - ref)))
    # bf16 MXU path vs f32 reference: allow 2e-2 (values are O(1)).
    assert jnp.allclose(out, ref, atol=2e-2, rtol=2e-2), max_err

    print("KERNEL_OK")
</pallas_src>

<mosaic_0001>
module attributes {stable_mosaic.version = 11 : i64} {
  func.func @_residual_block_kernel(%arg0: i32, %arg1: memref<16x4xbf16, #tpu.memory_space<vmem>>, %arg2: memref<12x16xbf16, #tpu.memory_space<vmem>>, %arg3: memref<24x8xbf16, #tpu.memory_space<vmem>>, %arg4: memref<24x8xbf16, #tpu.memory_space<vmem>>, %arg5: memref<1x8xf32, #tpu.memory_space<vmem>>, %arg6: memref<8x8xf32, #tpu.memory_space<vmem>>, %arg7: memref<16x8xf32, #tpu.memory_space<vmem>>) attributes {dimension_semantics = [#tpu.dimension_semantics<parallel>], iteration_bounds = array<i64: 2>, scalar_prefetch = 0 : i64, scratch_operands = 1 : i64, tpu.core_type = #tpu.core_type<tc>, window_params = [{transform_indices = @transform_0, window_bounds = array<i64: 16, 4>}, {pipeline_mode = #tpu.pipeline_mode<synchronous>, transform_indices = @transform_1, window_bounds = array<i64: 12, 16>}, {pipeline_mode = #tpu.pipeline_mode<synchronous>, transform_indices = @transform_2, window_bounds = array<i64: 24, 8>}, {pipeline_mode = #tpu.pipeline_mode<synchronous>, transform_indices = @transform_3, window_bounds = array<i64: 24, 8>}, {pipeline_mode = #tpu.pipeline_mode<synchronous>, transform_indices = @transform_4, window_bounds = array<i64: 1, 8>}, {transform_indices = @transform_5, window_bounds = array<i64: 8, 8>}]} {
    %0 = tpu.iota {dimensions = array<i32: 0>} : vector<16x1xi32>
    %c16_i32 = arith.constant 16 : i32
    %c0_i32 = arith.constant 0 : i32
    %1 = arith.cmpi eq, %c16_i32, %c0_i32 : i32
    %c1_i32 = arith.constant 1 : i32
    %2 = arith.select %1, %c1_i32, %c16_i32 : i32
    %3 = vector.broadcast %2 : i32 to vector<16x1xi32>
    %4 = arith.remsi %0, %3 : vector<16x1xi32>
    %c0_i32_0 = arith.constant 0 : i32
    %5 = vector.broadcast %c0_i32_0 : i32 to vector<16x1xi32>
    %6 = arith.cmpi ne, %4, %5 : vector<16x1xi32>
    %c0_i32_1 = arith.constant 0 : i32
    %7 = vector.broadcast %c0_i32_1 : i32 to vector<16x1xi32>
    %8 = arith.cmpi slt, %4, %7 : vector<16x1xi32>
    %c0_i32_2 = arith.constant 0 : i32
    %9 = arith.cmpi slt, %2, %c0_i32_2 : i32
    %10 = vector.broadcast %9 : i1 to vector<16x1xi1>
    %11 = vector.broadcast %10 : vector<16x1xi1> to vector<16x1xi1>
    %12 = arith.xori %8, %11 : vector<16x1xi1>
    %13 = arith.andi %12, %6 : vector<16x1xi1>
    %14 = vector.broadcast %2 : i32 to vector<16x1xi32>
    %15 = arith.addi %4, %14 : vector<16x1xi32>
    %16 = arith.select %13, %15, %4 : vector<16x1xi1>, vector<16x1xi32>
    %c0_i32_3 = arith.constant 0 : i32
    %17 = vector.broadcast %c0_i32_3 : i32 to vector<16x1xi32>
    %18 = arith.cmpi ne, %16, %17 : vector<16x1xi32>
    %19 = arith.extui %18 : vector<16x1xi1> to vector<16x1xi32>
    %20 = arith.sitofp %19 : vector<16x1xi32> to vector<16x1xf32>
    %c15_i32 = arith.constant 15 : i32
    %21 = vector.broadcast %c15_i32 : i32 to vector<16x1xi32>
    %22 = arith.cmpi ne, %16, %21 : vector<16x1xi32>
    %23 = arith.extui %22 : vector<16x1xi1> to vector<16x1xi32>
    %24 = arith.sitofp %23 : vector<16x1xi32> to vector<16x1xf32>
    %25 = vector.shape_cast %20 : vector<16x1xf32> to vector<16x1xf32>
    %26 = vector.broadcast %25 : vector<16x1xf32> to vector<16x4xf32>
    %27 = vector.shape_cast %24 : vector<16x1xf32> to vector<16x1xf32>
    %28 = vector.broadcast %27 : vector<16x1xf32> to vector<16x4xf32>
    %29 = vector.shape_cast %20 : vector<16x1xf32> to vector<16x1xf32>
    %30 = vector.broadcast %29 : vector<16x1xf32> to vector<16x8xf32>
    %31 = vector.shape_cast %24 : vector<16x1xf32> to vector<16x1xf32>
    %32 = vector.broadcast %31 : vector<16x1xf32> to vector<16x8xf32>
    %c0 = arith.constant 0 : index
    %c0_4 = arith.constant 0 : index
    %33 = vector.load %arg1[%c0, %c0_4] : memref<16x4xbf16, #tpu.memory_space<vmem>>, vector<16x4xbf16>
    %34 = arith.extf %33 : vector<16x4xbf16> to vector<16x4xf32>
    %c1_i32_5 = arith.constant 1 : i32
    %35 = tpu.dynamic_rotate %34 by %c1_i32_5 dim 0 : vector<16x4xf32>, i32 -> vector<16x4xf32>
    %36 = arith.mulf %35, %26 : vector<16x4xf32>
    %c15_i32_6 = arith.constant 15 : i32
    %37 = tpu.dynamic_rotate %34 by %c15_i32_6 dim 0 : vector<16x4xf32>, i32 -> vector<16x4xf32>
    %38 = arith.mulf %37, %28 : vector<16x4xf32>
    %39 = arith.truncf %36 : vector<16x4xf32> to vector<16x4xbf16>
    %40 = arith.truncf %34 : vector<16x4xf32> to vector<16x4xbf16>
    %41 = arith.truncf %38 : vector<16x4xf32> to vector<16x4xbf16>
    %42 = tpu.concatenate %39, %40, %41 in 1 : vector<16x4xbf16>, vector<16x4xbf16>, vector<16x4xbf16> -> vector<16x12xbf16>
    %c0_7 = arith.constant 0 : index
    %c0_8 = arith.constant 0 : index
    %43 = vector.load %arg2[%c0_7, %c0_8] : memref<12x16xbf16, #tpu.memory_space<vmem>>, vector<12x16xbf16>
    %cst = arith.constant dense<0.000000e+00> : vector<16x16xf32>
    %44 = tpu.matmul %42, %43, %cst {dimension_numbers = #tpu.dot_dimension_numbers<[1], [0], [0], [1], [0, 0, 1, 1], [], []>} : vector<16x12xbf16>, vector<12x16xbf16>, vector<16x16xf32> -> vector<16x16xf32>
    %45 = vector.extract_strided_slice %44 {offsets = [0, 0], sizes = [16, 8], strides = [1, 1]} : vector<16x16xf32> to vector<16x8xf32>
    %cst_9 = arith.constant 0.000000e+00 : f32
    %46 = vector.broadcast %cst_9 : f32 to vector<16x8xf32>
    %47 = arith.cmpf oge, %45, %46 : vector<16x8xf32>
    %cst_10 = arith.constant 0.00999999977 : f32
    %48 = vector.broadcast %cst_10 : f32 to vector<16x8xf32>
    %49 = arith.mulf %48, %45 : vector<16x8xf32>
    %50 = arith.select %47, %45, %49 : vector<16x8xi1>, vector<16x8xf32>
    %51 = vector.extract_strided_slice %44 {offsets = [0, 8], sizes = [16, 8], strides = [1, 1]} : vector<16x16xf32> to vector<16x8xf32>
    %c1_i32_11 = arith.constant 1 : i32
    %52 = tpu.dynamic_rotate %50 by %c1_i32_11 dim 0 : vector<16x8xf32>, i32 -> vector<16x8xf32>
    %53 = arith.mulf %52, %30 : vector<16x8xf32>
    %c15_i32_12 = arith.constant 15 : i32
    %54 = tpu.dynamic_rotate %50 by %c15_i32_12 dim 0 : vector<16x8xf32>, i32 -> vector<16x8xf32>
    %55 = arith.mulf %54, %32 : vector<16x8xf32>
    %56 = arith.truncf %53 : vector<16x8xf32> to vector<16x8xbf16>
    %57 = arith.truncf %50 : vector<16x8xf32> to vector<16x8xbf16>
    %58 = arith.truncf %55 : vector<16x8xf32> to vector<16x8xbf16>
    %59 = tpu.concatenate %56, %57, %58 in 1 : vector<16x8xbf16>, vector<16x8xbf16>, vector<16x8xbf16> -> vector<16x24xbf16>
    %c0_13 = arith.constant 0 : index
    %c0_14 = arith.constant 0 : index
    %60 = vector.load %arg3[%c0_13, %c0_14] : memref<24x8xbf16, #tpu.memory_space<vmem>>, vector<24x8xbf16>
    %cst_15 = arith.constant dense<0.000000e+00> : vector<16x8xf32>
    %61 = tpu.matmul %59, %60, %cst_15 {dimension_numbers = #tpu.dot_dimension_numbers<[1], [0], [0], [1], [0, 0, 1, 1], [], []>} : vector<16x24xbf16>, vector<24x8xbf16>, vector<16x8xf32> -> vector<16x8xf32>
    %c0_16 = arith.constant 0 : index
    %c0_17 = arith.constant 0 : index
    %62 = vector.load %arg5[%c0_16, %c0_17] : memref<1x8xf32, #tpu.memory_space<vmem>>, vector<1x8xf32>
    %63 = vector.broadcast %62 : vector<1x8xf32> to vector<16x8xf32>
    %64 = arith.addf %61, %63 : vector<16x8xf32>
    %cst_18 = arith.constant 0.000000e+00 : f32
    %65 = vector.broadcast %cst_18 : f32 to vector<16x8xf32>
    %66 = arith.cmpf oge, %64, %65 : vector<16x8xf32>
    %cst_19 = arith.constant 0.00999999977 : f32
    %67 = vector.broadcast %cst_19 : f32 to vector<16x8xf32>
    %68 = arith.mulf %67, %64 : vector<16x8xf32>
    %69 = arith.select %66, %64, %68 : vector<16x8xi1>, vector<16x8xf32>
    %c1_i32_20 = arith.constant 1 : i32
    %70 = tpu.dynamic_rotate %69 by %c1_i32_20 dim 0 : vector<16x8xf32>, i32 -> vector<16x8xf32>
    %71 = arith.mulf %70, %30 : vector<16x8xf32>
    %c15_i32_21 = arith.constant 15 : i32
    %72 = tpu.dynamic_rotate %69 by %c15_i32_21 dim 0 : vector<16x8xf32>, i32 -> vector<16x8xf32>
    %73 = arith.mulf %72, %32 : vector<16x8xf32>
    %74 = arith.truncf %71 : vector<16x8xf32> to vector<16x8xbf16>
    %75 = arith.truncf %69 : vector<16x8xf32> to vector<16x8xbf16>
    %76 = arith.truncf %73 : vector<16x8xf32> to vector<16x8xbf16>
    %77 = tpu.concatenate %74, %75, %76 in 1 : vector<16x8xbf16>, vector<16x8xbf16>, vector<16x8xbf16> -> vector<16x24xbf16>
    %c0_22 = arith.constant 0 : index
    %c0_23 = arith.constant 0 : index
    %78 = vector.load %arg4[%c0_22, %c0_23] : memref<24x8xbf16, #tpu.memory_space<vmem>>, vector<24x8xbf16>
    %cst_24 = arith.constant dense<0.000000e+00> : vector<16x8xf32>
    %79 = tpu.matmul %77, %78, %cst_24 {dimension_numbers = #tpu.dot_dimension_numbers<[1], [0], [0], [1], [0, 0, 1, 1], [], []>} : vector<16x24xbf16>, vector<24x8xbf16>, vector<16x8xf32> -> vector<16x8xf32>
    %cst_25 = arith.constant 0.000000e+00 : f32
    %80 = vector.broadcast %cst_25 : f32 to vector<16x8xf32>
    %81 = arith.cmpf oge, %79, %80 : vector<16x8xf32>
    %cst_26 = arith.constant 0.00999999977 : f32
    %82 = vector.broadcast %cst_26 : f32 to vector<16x8xf32>
    %83 = arith.mulf %82, %79 : vector<16x8xf32>
    %84 = arith.select %81, %79, %83 : vector<16x8xi1>, vector<16x8xf32>
    %c15_i32_27 = arith.constant 15 : i32
    %85 = tpu.dynamic_rotate %84 by %c15_i32_27 dim 0 : vector<16x8xf32>, i32 -> vector<16x8xf32>
    %86 = arith.maximumf %84, %85 : vector<16x8xf32>
    %c15_i32_28 = arith.constant 15 : i32
    %87 = tpu.dynamic_rotate %51 by %c15_i32_28 dim 0 : vector<16x8xf32>, i32 -> vector<16x8xf32>
    %88 = arith.maximumf %51, %87 : vector<16x8xf32>
    %89 = arith.addf %86, %88 : vector<16x8xf32>
    %cst_29 = arith.constant 0.000000e+00 : f32
    %90 = vector.broadcast %cst_29 : f32 to vector<16x8xf32>
    %91 = arith.cmpf oge, %89, %90 : vector<16x8xf32>
    %cst_30 = arith.constant 0.00999999977 : f32
    %92 = vector.broadcast %cst_30 : f32 to vector<16x8xf32>
    %93 = arith.mulf %92, %89 : vector<16x8xf32>
    %94 = arith.select %91, %89, %93 : vector<16x8xi1>, vector<16x8xf32>
    %c0_31 = arith.constant 0 : index
    %c0_32 = arith.constant 0 : index
    %95 = vector.load %arg7[%c0_31, %c0_32] : memref<16x8xf32, #tpu.memory_space<vmem>>, vector<16x8xf32>
    tpu.vector_store %arg7[%c0_31, %c0_32], %94 {strides = array<i32>} : memref<16x8xf32, #tpu.memory_space<vmem>>, vector<16x8xf32>,
    %c0_33 = arith.constant 0 : index
    %c0_34 = arith.constant 0 : index
    %96 = tpu.strided_load %arg7[%c0_33, %c0_34] {strides = array<i32: 2, 1>} : memref<16x8xf32, #tpu.memory_space<vmem>>, vector<8x8xf32>
    %c0_35 = arith.constant 0 : index
    %c0_36 = arith.constant 0 : index
    %97 = vector.load %arg6[%c0_35, %c0_36] : memref<8x8xf32, #tpu.memory_space<vmem>>, vector<8x8xf32>
    tpu.vector_store %arg6[%c0_35, %c0_36], %96 {strides = array<i32>} : memref<8x8xf32, #tpu.memory_space<vmem>>, vector<8x8xf32>,
    return
  }
  func.func @transform_0(%arg0: i32) -> (i32, i32) {
    %c0_i32 = arith.constant 0 : i32
    %c0_i32_0 = arith.constant 0 : i32
    return %arg0, %c0_i32 : i32, i32
  }
  func.func @transform_1(%arg0: i32) -> (i32, i32) {
    %c0_i32 = arith.constant 0 : i32
    %c0_i32_0 = arith.constant 0 : i32
    %c0_i32_1 = arith.constant 0 : i32
    return %c0_i32, %c0_i32_0 : i32, i32
  }
  func.func @transform_2(%arg0: i32) -> (i32, i32) {
    %c0_i32 = arith.constant 0 : i32
    %c0_i32_0 = arith.constant 0 : i32
    %c0_i32_1 = arith.constant 0 : i32
    return %c0_i32, %c0_i32_0 : i32, i32
  }
  func.func @transform_3(%arg0: i32) -> (i32, i32) {
    %c0_i32 = arith.constant 0 : i32
    %c0_i32_0 = arith.constant 0 : i32
    %c0_i32_1 = arith.constant 0 : i32
    return %c0_i32, %c0_i32_0 : i32, i32
  }
  func.func @transform_4(%arg0: i32) -> (i32, i32) {
    %c0_i32 = arith.constant 0 : i32
    %c0_i32_0 = arith.constant 0 : i32
    %c0_i32_1 = arith.constant 0 : i32
    return %c0_i32, %c0_i32_0 : i32, i32
  }
  func.func @transform_5(%arg0: i32) -> (i32, i32) {
    %c0_i32 = arith.constant 0 : i32
    %c0_i32_0 = arith.constant 0 : i32
    return %arg0, %c0_i32 : i32, i32
  }
}

</mosaic_0001>

<llo_original>
// kernel: tpu_custom_call.1
$region0: #{tpu_custom_call.1}
  #allocation0 [shape = 'u32[]', space=smem, size = 0x4, offset = 0x4, fixed_abs, tag = 'smem constant byte address 0x4 - core index']
  #allocation1 [shape = 'u32[72,128]{1,0:T(1,128)}', space=vmem, size = 0x9000, scoped, tag = 'internal scratch']
  #allocation2 [shape = 'f32[16,8]{1,0:T(8,128)}', space=vmem, size = 0x2000, scoped, tag = 'scratch operand']
  %s0 = inlined_call_operand.vmem [shape: bf16[32,4], index: 0, kind: input, shape index: {}]
  %s1 = inlined_call_operand.vmem [shape: bf16[12,16], index: 1, kind: input, shape index: {}]
  %s2 = inlined_call_operand.vmem [shape: bf16[24,8], index: 2, kind: input, shape index: {}]
  %s3 = inlined_call_operand.vmem [shape: bf16[24,8], index: 3, kind: input, shape index: {}]
  %s4 = inlined_call_operand.vmem [shape: f32[1,8], index: 4, kind: input, shape index: {}]
  %s5 = inlined_call_operand.vmem [shape: f32[16,8], index: 5, kind: output, shape index: {}]
  %s6 = sld [smem:[#allocation0]]
  $region53: #{tpu_custom_call.1} parent=0
    _
  %s8 = ssub.s32 1, %s6
  %s9 = scalar_select 0, %s8, %s6
  loop: start=0, step=1, limit=4
  $region2: #{tpu_custom_call.1} parent=0 // loop_pre_header
    _
  $region3: #{tpu_custom_call.1} parent=0 // loop_header
    %s11 = sphi 0, %s15
    %p12 = scmp.ge.s32.totalorder %s11, 4
    %s21 = sphi 0, %s23
    %s24 = sphi 0, %s21
    %s25 = sphi 0, %s24
    %s41 = sphi 0, %s25
    %s45 = sphi 0, %s45
    %s47 = sphi 0, %s45
    %s48 = sphi 0, %s47
    %s62 = sphi 0, %s48
    %s66 = sphi 0, %s66
    %s68 = sphi 0, %s66
    %s69 = sphi 0, %s68
    %s83 = sphi 0, %s69
    %s87 = sphi 0, %s87
    %s89 = sphi 0, %s87
    %s90 = sphi 0, %s89
    %s104 = sphi 0, %s90
    %s108 = sphi 0, %s108
    %s110 = sphi 0, %s108
    %s111 = sphi 0, %s110
    %s125 = sphi 0, %s111
    %s131 = sphi 0, %s133
    %s134 = sphi 0, %s131
    %s135 = sphi 0, %s134
    %s151 = sphi 0, %s135
  $region4: #{tpu_custom_call.1} parent=0 // loop_header_branch
    %14 = sbr.rel (%p12) target = $region8
  $region5: #{tpu_custom_call.1} parent=0 // loop_body
    %s16 = ssub.s32 %s11, 1
    %s17 = ssub.s32 %s11, 2
    %s18 = sadd.s32 %s11, 1
    %s19 = ssub.s32 %s11, %s18
    %p20 = scmp.eq.s32.totalorder %s19, 0
    %s22 = sadd.s32 %s21, 1
    %s23 = scalar_select %p20, %s21, %s22
    %p26 = pneg %p20
    %p27 = scmp.eq.s32.totalorder %s11, 1
    %p28 = por %p26, %p27
    %p29 = scmp.ne.s32.totalorder %s21, %s24
    %p30 = scmp.eq.s32.totalorder %s11, 0
    %p31 = por %p29, %p30
    %p32 = scmp.ne.s32.totalorder %s21, %s24
    %p33 = scmp.eq.s32.totalorder %s16, 1
    %p34 = por %p32, %p33
    %p35 = scmp.ne.s32.totalorder %s24, %s25
    %p36 = scmp.eq.s32.totalorder %s16, 0
    %p37 = por %p35, %p36
    %p38 = scmp.ne.s32.totalorder %s24, %s25
    %p39 = scmp.eq.s32.totalorder %s17, 1
    %p40 = por %p38, %p39
    %p42 = scmp.ne.s32.totalorder %s25, %s41
    %p43 = scmp.eq.s32.totalorder %s17, 0
    %p44 = por %p42, %p43
    %s46 = sadd.s32 %s45, 1
    %p49 = scmp.eq.s32.totalorder %s11, 1
    %p50 = scmp.ne.s32.totalorder %s45, %s47
    %p51 = scmp.eq.s32.totalorder %s11, 0
    %p52 = por %p50, %p51
    %p53 = scmp.ne.s32.totalorder %s45, %s47
    %p54 = scmp.eq.s32.totalorder %s16, 1
    %p55 = por %p53, %p54
    %p56 = scmp.ne.s32.totalorder %s47, %s48
    %p57 = scmp.eq.s32.totalorder %s16, 0
    %p58 = por %p56, %p57
    %p59 = scmp.ne.s32.totalorder %s47, %s48
    %p60 = scmp.eq.s32.totalorder %s17, 1
    %p61 = por %p59, %p60
    %p63 = scmp.ne.s32.totalorder %s48, %s62
    %p64 = scmp.eq.s32.totalorder %s17, 0
    %p65 = por %p63, %p64
    %s67 = sadd.s32 %s66, 1
    %p70 = scmp.eq.s32.totalorder %s11, 1
    %p71 = scmp.ne.s32.totalorder %s66, %s68
    %p72 = scmp.eq.s32.totalorder %s11, 0
    %p73 = por %p71, %p72
    %p74 = scmp.ne.s32.totalorder %s66, %s68
    %p75 = scmp.eq.s32.totalorder %s16, 1
    %p76 = por %p74, %p75
    %p77 = scmp.ne.s32.totalorder %s68, %s69
    %p78 = scmp.eq.s32.totalorder %s16, 0
    %p79 = por %p77, %p78
    %p80 = scmp.ne.s32.totalorder %s68, %s69
    %p81 = scmp.eq.s32.totalorder %s17, 1
    %p82 = por %p80, %p81
    %p84 = scmp.ne.s32.totalorder %s69, %s83
    %p85 = scmp.eq.s32.totalorder %s17, 0
    %p86 = por %p84, %p85
    %s88 = sadd.s32 %s87, 1
    %p91 = scmp.eq.s32.totalorder %s11, 1
    %p92 = scmp.ne.s32.totalorder %s87, %s89
    %p93 = scmp.eq.s32.totalorder %s11, 0
    %p94 = por %p92, %p93
    %p95 = scmp.ne.s32.totalorder %s87, %s89
    %p96 = scmp.eq.s32.totalorder %s16, 1
    %p97 = por %p95, %p96
    %p98 = scmp.ne.s32.totalorder %s89, %s90
    %p99 = scmp.eq.s32.totalorder %s16, 0
    %p100 = por %p98, %p99
    %p101 = scmp.ne.s32.totalorder %s89, %s90
    %p102 = scmp.eq.s32.totalorder %s17, 1
    %p103 = por %p101, %p102
    %p105 = scmp.ne.s32.totalorder %s90, %s104
    %p106 = scmp.eq.s32.totalorder %s17, 0
    %p107 = por %p105, %p106
    %s109 = sadd.s32 %s108, 1
    %p112 = scmp.eq.s32.totalorder %s11, 1
    %p113 = scmp.ne.s32.totalorder %s108, %s110
    %p114 = scmp.eq.s32.totalorder %s11, 0
    %p115 = por %p113, %p114
    %p116 = scmp.ne.s32.totalorder %s108, %s110
    %p117 = scmp.eq.s32.totalorder %s16, 1
    %p118 = por %p116, %p117
    %p119 = scmp.ne.s32.totalorder %s110, %s111
    %p120 = scmp.eq.s32.totalorder %s16, 0
    %p121 = por %p119, %p120
    %p122 = scmp.ne.s32.totalorder %s110, %s111
    %p123 = scmp.eq.s32.totalorder %s17, 1
    %p124 = por %p122, %p123
    %p126 = scmp.ne.s32.totalorder %s111, %s125
    %p127 = scmp.eq.s32.totalorder %s17, 0
    %p128 = por %p126, %p127
    %s129 = ssub.s32 %s11, %s18
    %p130 = scmp.eq.s32.totalorder %s129, 0
    %s132 = sadd.s32 %s131, 1
    %s133 = scalar_select %p130, %s131, %s132
    %p136 = pneg %p130
    %p137 = scmp.eq.s32.totalorder %s11, 1
    %p138 = por %p136, %p137
    %p139 = scmp.ne.s32.totalorder %s131, %s134
    %p140 = scmp.eq.s32.totalorder %s11, 0
    %p141 = por %p139, %p140
    %p142 = scmp.ne.s32.totalorder %s131, %s134
    %p143 = scmp.eq.s32.totalorder %s16, 1
    %p144 = por %p142, %p143
    %p145 = scmp.ne.s32.totalorder %s134, %s135
    %p146 = scmp.eq.s32.totalorder %s16, 0
    %p147 = por %p145, %p146
    %p148 = scmp.ne.s32.totalorder %s134, %s135
    %p149 = scmp.eq.s32.totalorder %s17, 1
    %p150 = por %p148, %p149
    %p152 = scmp.ne.s32.totalorder %s135, %s151
    %p153 = scmp.eq.s32.totalorder %s17, 0
    %p154 = por %p152, %p153
    %p155 = scmp.le.s32.totalorder 1, %s11
    %p156 = scmp.lt.s32.totalorder %s11, 3
    %p157 = pnand %p155, %p156
    %p158 = pneg %p157
    // Predicated region
    $region9: #{tpu_custom_call.1} parent=5 // pred_check
      _
    $region10: #{tpu_custom_call.1} parent=5 // pred_check_branch
      %160 = sbr.rel (%p157) target = $region12
    $region11: #{tpu_custom_call.1} parent=5 // pred_region
      %s161 = ssub.s32 %s11, 1
      // Predicated region
      $region13: #{tpu_custom_call.1} parent=11 // pred_check
        %p162 = pneg %p58
      $region14: #{tpu_custom_call.1} parent=11 // pred_check_branch
        %164 = sbr.rel (%p162) target = $region16
      $region15: #{tpu_custom_call.1} parent=11 // pred_region
        _
      $region16: #{tpu_custom_call.1} parent=11 // pred_fallthru
        _
      // Predicated region
      $region17: #{tpu_custom_call.1} parent=11 // pred_check
        %p165 = pneg %p79
      $region18: #{tpu_custom_call.1} parent=11 // pred_check_branch
        %167 = sbr.rel (%p165) target = $region20
      $region19: #{tpu_custom_call.1} parent=11 // pred_region
        _
      $region20: #{tpu_custom_call.1} parent=11 // pred_fallthru
        _
      // Predicated region
      $region21: #{tpu_custom_call.1} parent=11 // pred_check
        %p168 = pneg %p100
      $region22: #{tpu_custom_call.1} parent=11 // pred_check_branch
        %170 = sbr.rel (%p168) target = $region24
      $region23: #{tpu_custom_call.1} parent=11 // pred_region
        _
      $region24: #{tpu_custom_call.1} parent=11 // pred_fallthru
        _
      // Predicated region
      $region25: #{tpu_custom_call.1} parent=11 // pred_check
        %p171 = pneg %p121
      $region26: #{tpu_custom_call.1} parent=11 // pred_check_branch
        %173 = sbr.rel (%p171) target = $region28
      $region27: #{tpu_custom_call.1} parent=11 // pred_region
        _
      $region28: #{tpu_custom_call.1} parent=11 // pred_fallthru
        _
    $region12: #{tpu_custom_call.1} parent=5 // pred_fallthru
      _
    %p174 = scmp.lt.s32.totalorder %s11, 2
    // Predicated region
    $region29: #{tpu_custom_call.1} parent=5 // pred_check
      %p175 = pneg %p174
    $region30: #{tpu_custom_call.1} parent=5 // pred_check_branch
      %177 = sbr.rel (%p175) target = $region32
    $region31: #{tpu_custom_call.1} parent=5 // pred_region
      // Predicated region
      $region33: #{tpu_custom_call.1} parent=31 // pred_check
        %p178 = pneg %p31
      $region34: #{tpu_custom_call.1} parent=31 // pred_check_branch
        %180 = sbr.rel (%p178) target = $region36
      $region35: #{tpu_custom_call.1} parent=31 // pred_region
        %s181 = smul.u32 2, %s11
        %p182 = scmp.lt.s32.totalorder %s181, 3
        %s183 = scalar_select %p182, %s181, 3
        %s184 = smul.addr %s183, 4
        %s185 = scalar_lea.vmem %s0, %s184
        %s186 = smul.u32 2, %s11
      $region36: #{tpu_custom_call.1} parent=31 // pred_fallthru
        _
    $region32: #{tpu_custom_call.1} parent=5 // pred_fallthru
      _
    %p187 = scmp.le.s32.totalorder 1, %s11
    %p188 = scmp.lt.s32.totalorder %s11, 3
    %p189 = pnand %p187, %p188
    %p190 = pneg %p189
    // Predicated region
    $region37: #{tpu_custom_call.1} parent=5 // pred_check
      _
    $region38: #{tpu_custom_call.1} parent=5 // pred_check_branch
      %192 = sbr.rel (%p189) target = $region40
    $region39: #{tpu_custom_call.1} parent=5 // pred_region
      %s193 = ssub.s32 %s11, 1
      %s194 = smul.u32 2, %s16
      %p195 = scmp.lt.s32.totalorder %s194, 3
      %s196 = scalar_select %p195, %s194, 3
      %s197 = smul.addr %s196, 4
      %s198 = scalar_lea.vmem %s0, %s197
      %p199 = pneg %p37
      %p200 = pneg %p34
      %p201 = pneg %p58
      %p202 = pneg %p55
      %p203 = pneg %p79
      %p204 = pneg %p76
      %p205 = pneg %p100
      %p206 = pneg %p97
      %p207 = pneg %p121
      %p208 = pneg %p118
      %p209 = pneg %p147
      %p210 = pneg %p144
      %p211 = scmp.lt.s32.totalorder %s16, 1
      %s212 = scalar_select %p211, %s16, 1
      %s213 = smul.addr %s212, 8
      %s214 = scalar_lea.vmem %s5, %s213
      %s215 = smul.u32 2, %s16
      %p216 = scmp.lt.s32.totalorder %s215, 3
      %s217 = scalar_select %p216, %s215, 3
      %s218 = smul.addr %s217, 4
      %s219 = scalar_lea.vmem %s0, %s218
      %s220 = smul.u32 2, %s16
      %p221 = scmp.lt.s32.totalorder %s16, 1
      %s222 = scalar_select %p221, %s16, 1
      %s223 = smul.addr %s222, 8
      %s224 = scalar_lea.vmem %s5, %s223
      %v226 = vlaneseq
      %v227 = vshrl.u32 %v226, 7
      %v228 = vadd.s32 %v227, 8
      %vm229 = vcmp.lt.s32.totalorder %v227, 0
      %v230 = vsub.s32 0, %v227
      %v231 = vsel %vm229, %v230, %v227
      %v232 = vshrl.u32 %v231, 4
      %v233 = vand.u32 %v231, 15
      %v234 = vsub.s32 0, %v233
      %v235 = vsel %vm229, %v234, %v233
      %vm236 = vcmp.lt.s32.totalorder %v228, 0
      %v237 = vsub.s32 0, %v228
      %v238 = vsel %vm236, %v237, %v228
      %v239 = vshrl.u32 %v238, 4
      %v240 = vand.u32 %v238, 15
      %v241 = vsub.s32 0, %v240
      %v242 = vsel %vm236, %v241, %v240
      %vm243 = vcmp.ne.s32.totalorder %v235, 0
      %vm244 = vcmp.ne.s32.totalorder %v242, 0
      %vm245 = vcmp.lt.s32.totalorder %v235, 0
      %vm246 = vcmp.lt.s32.totalorder %v242, 0
      %vm247 = vmand %vm245, %vm243
      %vm248 = vmand %vm246, %vm244
      %v249 = vadd.s32 %v235, 16
      %v250 = vadd.s32 %v242, 16
      %v251 = vsel %vm247, %v249, %v235
      %v252 = vsel %vm248, %v250, %v242
      %vm253 = vcmp.ne.s32.totalorder %v251, 0
      %vm254 = vcmp.ne.s32.totalorder %v252, 0
      %v255 = vsel %vm253, 1, 0
      %v256 = vsel %vm254, 1, 0
      %v257 = vcvt.s32.f32 %v255
      %v258 = vcvt.s32.f32 %v256
      %vm259 = vcmp.ne.s32.totalorder %v251, 15
      %vm260 = vcmp.ne.s32.totalorder %v252, 15
      %v261 = vsel %vm259, 1, 0
      %v262 = vsel %vm260, 1, 0
      %v263 = vcvt.s32.f32 %v261
      %v264 = vcvt.s32.f32 %v262
      %v265 = vld [vmem:[%s219] sm:$0xf]
      %v266 = vld [vmem:[%s219 + $0x4] sm:$0xf]
      %v267 = vunpack.c.l.bf16 %v265
      %v268 = vunpack.c.l.bf16 %v266
      %v269 = vrot.slane %v267, 7
      %v270 = vrot.slane %v268, 7
      %vm271 = vcmp.lt.s32.totalorder %v227, 1
      %v272 = vsel %vm271, %v269, %v270
      %v273 = vsel %vm271, %v270, %v269
      %v274 = vmul.f32 %v273, %v257
      %v275 = vmul.f32 %v272, %v258
      %v276 = vrot.slane %v267, 1
      %v277 = vrot.slane %v268, 1
      %vm278 = vcmp.lt.s32.totalorder %v227, 7
      %v279 = vsel %vm278, %v276, %v277
      %v280 = vsel %vm278, %v277, %v276
      %v281 = vmul.f32 %v279, %v263
      %v282 = vmul.f32 %v280, %v264
      %v283 = vpack.c.bf16 %v274, %v274
      %v284 = vpack.c.bf16 %v275, %v275
      %v285 = vpack.c.bf16 %v281, %v281
      %v286 = vpack.c.bf16 %v282, %v282
      %v289 = vunpack.c.l.b16 %v283
      %v290 = vunpack.c.l.b16 %v284
      %v291 = vpack.c.b16 %v290, %v289
      %v294 = vunpack.c.l.b16 %v265
      %v295 = vunpack.c.l.b16 %v266
      %v296 = vpack.c.b16 %v295, %v294
      %297 = vrot.lane.b32.xlu0 %v296, 4
      %v298 = vpop.permute.xlu0 %297
      %v301 = vunpack.c.l.b16 %v285
      %v302 = vunpack.c.l.b16 %v286
      %v303 = vpack.c.b16 %v302, %v301
      %304 = vrot.lane.b32.xlu0 %v303, 8
      %v305 = vpop.permute.xlu0 %304
      %vm306 = vcmask 31744
      %v309 = vsel %vm306, %v291, %v298
      %vm310 = vcmask 64512
      %v312 = vsel %vm310, %v309, %v305
      %v313 = vld [vmem:[%s1] sm:$0xf]
      %v314 = vld [vmem:[%s1 + $0x4] sm:$0x3]
      %v317 = vunpack.c.l.b16 %v313
      %v318 = vunpack.c.l.b16 %v314
      %v319 = vpack.c.b16 %v318, %v317
      %vm320 = vcmask 97280
      %v321 = vsel %vm320, %v312, 0
      %vm323 = vcmask 1045504
      %v325 = vsel %vm323, %v319, 0
      %327 = vmatpush.bf16.msra.mxu0 0
      %328 = vmatpush.bf16.msra.mxu0 0
      %329 = vmatpush.bf16.msra.mxu0 0
      %330 = vmatpush.bf16.msra.mxu0 0
      %331 = vmatpush.bf16.msra.mxu0 0
      %332 = vmatpush.bf16.msra.mxu0 0
      %333 = vmatpush.bf16.msra.mxu0 0
      %334 = vmatpush.bf16.msra.mxu0 %v325
      %335 = vmatmul.bf16.gmra.mxu0 %v321
      %v336 = vpop.f32.mrf.mxu0
      %v337 = vadd.f32 0.0, %v336
      %v338 = vpop.f32.mrf.mxu0
      %v339 = vadd.f32 0.0, %v338
      %340 = vdwg.mxu0
      %vm341 = vcmp.ge.f32.partialorder %v337, 0.0
      %vm342 = vcmp.ge.f32.partialorder %v339, 0.0
      %v343 = vmul.f32 %v337, 0.01
      %v344 = vmul.f32 %v339, 0.01
      %v345 = vsel %vm341, %v337, %v343
      %v346 = vsel %vm342, %v339, %v344
      %v347 = vrot.slane %v345, 7
      %v348 = vrot.slane %v346, 7
      %v349 = vsel %vm271, %v347, %v348
      %v350 = vsel %vm271, %v348, %v347
      %v351 = vmul.f32 %v350, %v257
      %v352 = vmul.f32 %v349, %v258
      %v353 = vrot.slane %v345, 1
      %v354 = vrot.slane %v346, 1
      %v355 = vsel %vm278, %v353, %v354
      %v356 = vsel %vm278, %v354, %v353
      %v357 = vmul.f32 %v355, %v263
      %v358 = vmul.f32 %v356, %v264
      %v359 = vpack.c.bf16 %v351, %v351
      %v360 = vpack.c.bf16 %v352, %v352
      %v361 = vpack.c.bf16 %v345, %v345
      %v362 = vpack.c.bf16 %v346, %v346
      %v363 = vpack.c.bf16 %v357, %v357
      %v364 = vpack.c.bf16 %v358, %v358
      %v367 = vunpack.c.l.b16 %v359
      %v368 = vunpack.c.l.b16 %v360
      %v369 = vpack.c.b16 %v368, %v367
      %v372 = vunpack.c.l.b16 %v361
      %v373 = vunpack.c.l.b16 %v362
      %v374 = vpack.c.b16 %v373, %v372
      %375 = vrot.lane.b32.xlu0 %v374, 8
      %v376 = vpop.permute.xlu0 %375
      %v379 = vunpack.c.l.b16 %v363
      %v380 = vunpack.c.l.b16 %v364
      %v381 = vpack.c.b16 %v380, %v379
      %382 = vrot.lane.b32.xlu0 %v381, 16
      %v383 = vpop.permute.xlu0 %382
      %v386 = vsel %vm310, %v369, %v376
      %vm387 = vcmask 130048
      %v389 = vsel %vm387, %v386, %v383
      %v390 = vld [vmem:[%s2] sm:$0xf]
      %v391 = vld [vmem:[%s2 + $0x4] sm:$0xf]
      %v392 = vld [vmem:[%s2 + $0x8] sm:$0xf]
      %v393 = vld [vmem:[%s4] sm:$0x1]
      %v395 = vperm.slane %v393, 0
      %v400 = vunpack.c.l.b16 %v390
      %v401 = vunpack.c.l.b16 %v391
      %v402 = vunpack.c.l.b16 %v392
      %v403 = vpack.c.b16 %v401, %v400
      %v404 = vpack.c.b16 %v402, %v402
      %vm406 = vcmask 195584
      %v407 = vsel %vm406, %v389, 0
      %vm409 = vcmask 1043456
      %v411 = vsel %vm409, %v404, 0
      %413 = vmatpush.bf16.msra.mxu0 0
      %414 = vmatpush.bf16.msra.mxu0 0
      %415 = vmatpush.bf16.msra.mxu0 0
      %416 = vmatpush.bf16.msra.mxu0 0
      %417 = vmatpush.bf16.msra.mxu0 0
      %418 = vmatpush.bf16.msra.mxu0 0
      %419 = vmatpush.bf16.msra.mxu0 %v411
      %420 = vmatpush.bf16.msra.mxu0 %v403
      %421 = vmatmul.bf16.gmra.mxu0 %v407
      %v422 = vpop.f32.mrf.mxu0
      %v423 = vadd.f32 %v395, %v422
      %v424 = vpop.f32.mrf.mxu0
      %v425 = vadd.f32 %v395, %v424
      %426 = vdwg.mxu0
      %vm427 = vcmp.ge.f32.partialorder %v423, 0.0
      %vm428 = vcmp.ge.f32.partialorder %v425, 0.0
      %v429 = vmul.f32 %v423, 0.01
      %v430 = vmul.f32 %v425, 0.01
      %v431 = vsel %vm427, %v423, %v429
      %v432 = vsel %vm428, %v425, %v430
      %v433 = vrot.slane %v431, 7
      %v434 = vrot.slane %v432, 7
      %v435 = vsel %vm271, %v433, %v434
      %v436 = vsel %vm271, %v434, %v433
      %v437 = vmul.f32 %v436, %v257
      %v438 = vmul.f32 %v435, %v258
      %v439 = vrot.slane %v431, 1
      %v440 = vrot.slane %v432, 1
      %v441 = vsel %vm278, %v439, %v440
      %v442 = vsel %vm278, %v440, %v439
      %v443 = vmul.f32 %v441, %v263
      %v444 = vmul.f32 %v442, %v264
      %v445 = vpack.c.bf16 %v437, %v437
      %v446 = vpack.c.bf16 %v438, %v438
      %v447 = vpack.c.bf16 %v431, %v431
      %v448 = vpack.c.bf16 %v432, %v432
      %v449 = vpack.c.bf16 %v443, %v443
      %v450 = vpack.c.bf16 %v444, %v444
      %v453 = vunpack.c.l.b16 %v445
      %v454 = vunpack.c.l.b16 %v446
      %v455 = vpack.c.b16 %v454, %v453
      %v458 = vunpack.c.l.b16 %v447
      %v459 = vunpack.c.l.b16 %v448
      %v460 = vpack.c.b16 %v459, %v458
      %461 = vrot.lane.b32.xlu0 %v460, 8
      %v462 = vpop.permute.xlu0 %461
      %v465 = vunpack.c.l.b16 %v449
      %v466 = vunpack.c.l.b16 %v450
      %v467 = vpack.c.b16 %v466, %v465
      %468 = vrot.lane.b32.xlu0 %v467, 16
      %v469 = vpop.permute.xlu0 %468
      %v472 = vsel %vm310, %v455, %v462
      %v474 = vsel %vm387, %v472, %v469
      %v475 = vld [vmem:[%s3] sm:$0xf]
      %v476 = vld [vmem:[%s3 + $0x4] sm:$0xf]
      %v477 = vld [vmem:[%s3 + $0x8] sm:$0xf]
      %v481 = vunpack.c.l.b16 %v475
      %v482 = vunpack.c.l.b16 %v476
      %v483 = vunpack.c.l.b16 %v477
      %v484 = vpack.c.b16 %v482, %v481
      %v485 = vpack.c.b16 %v483, %v483
      %v487 = vsel %vm406, %v474, 0
      %v490 = vsel %vm409, %v485, 0
      %492 = vmatpush.bf16.msra.mxu0 0
      %493 = vmatpush.bf16.msra.mxu0 0
      %494 = vmatpush.bf16.msra.mxu0 0
      %495 = vmatpush.bf16.msra.mxu0 0
      %496 = vmatpush.bf16.msra.mxu0 0
      %497 = vmatpush.bf16.msra.mxu0 0
      %498 = vmatpush.bf16.msra.mxu0 %v490
      %499 = vmatpush.bf16.msra.mxu0 %v484
      %500 = vmatmul.bf16.gmra.mxu0 %v487
      %v501 = vpop.f32.mrf.mxu0
      %v502 = vadd.f32 0.0, %v501
      %v503 = vpop.f32.mrf.mxu0
      %v504 = vadd.f32 0.0, %v503
      %505 = vdwg.mxu0
      %vm506 = vcmp.ge.f32.partialorder %v502, 0.0
      %vm507 = vcmp.ge.f32.partialorder %v504, 0.0
      %v508 = vmul.f32 %v502, 0.01
      %v509 = vmul.f32 %v504, 0.01
      %v510 = vsel %vm506, %v502, %v508
      %v511 = vsel %vm507, %v504, %v509
      %v512 = vrot.slane %v510, 1
      %v513 = vrot.slane %v511, 1
      %v514 = vsel %vm278, %v512, %v513
      %v515 = vsel %vm278, %v513, %v512
      %v516 = vmax.f32 %v510, %v514
      %v517 = vmax.f32 %v511, %v515
      %520 = vrot.lane.b32.xlu0 %v337, 120
      %v521 = vpop.permute.xlu0 %520
      %522 = vrot.lane.b32.xlu0 %v339, 120
      %v523 = vpop.permute.xlu0 %522
      %v526 = vrot.slane %v521, 1
      %v527 = vrot.slane %v523, 1
      %v528 = vsel %vm278, %v526, %v527
      %v529 = vsel %vm278, %v527, %v526
      %532 = vrot.lane.b32.xlu0 %v528, 8
      %v533 = vpop.permute.xlu0 %532
      %534 = vrot.lane.b32.xlu0 %v529, 8
      %v535 = vpop.permute.xlu0 %534
      %v538 = vmax.f32 %v337, %v533
      %v539 = vmax.f32 %v339, %v535
      %542 = vrot.lane.b32.xlu0 %v538, 120
      %v543 = vpop.permute.xlu0 %542
      %544 = vrot.lane.b32.xlu0 %v539, 120
      %v545 = vpop.permute.xlu0 %544
      %v548 = vadd.f32 %v516, %v543
      %v549 = vadd.f32 %v517, %v545
      %vm550 = vcmp.ge.f32.partialorder %v548, 0.0
      %vm551 = vcmp.ge.f32.partialorder %v549, 0.0
      %v552 = vmul.f32 %v548, 0.01
      %v553 = vmul.f32 %v549, 0.01
      %v554 = vsel %vm550, %v548, %v552
      %v555 = vsel %vm551, %v549, %v553
      %556 = vst.msk [vmem:[#allocation2] sm:$0xff] %vm310, %v554
      %557 = vst.msk [vmem:[#allocation2 + $0x8] sm:$0xff] %vm310, %v555
      %v558 = vld [vmem:[#allocation2] ss:$2 sm:$0xff]
      %559 = vst.msk [vmem:[%s224] sm:$0xff] %vm310, %v558
      %p560 = scmp.lt.s32.totalorder %s16, 1
      %s561 = scalar_select %p560, %s16, 1
      %s562 = smul.addr %s561, 8
      %s563 = scalar_lea.vmem %s5, %s562
      // Predicated region
      $region41: #{tpu_custom_call.1} parent=39 // pred_check
        %p564 = pneg %p144
      $region42: #{tpu_custom_call.1} parent=39 // pred_check_branch
        %566 = sbr.rel (%p564) target = $region44
      $region43: #{tpu_custom_call.1} parent=39 // pred_region
        _
      $region44: #{tpu_custom_call.1} parent=39 // pred_fallthru
        _
    $region40: #{tpu_custom_call.1} parent=5 // pred_fallthru
      _
    %p567 = scmp.le.s32.totalorder 2, %s11
    // Predicated region
    $region45: #{tpu_custom_call.1} parent=5 // pred_check
      %p568 = pneg %p567
    $region46: #{tpu_custom_call.1} parent=5 // pred_check_branch
      %570 = sbr.rel (%p568) target = $region48
    $region47: #{tpu_custom_call.1} parent=5 // pred_region
      %s571 = ssub.s32 %s11, 2
      // Predicated region
      $region49: #{tpu_custom_call.1} parent=47 // pred_check
        %p572 = pneg %p150
      $region50: #{tpu_custom_call.1} parent=47 // pred_check_branch
        %574 = sbr.rel (%p572) target = $region52
      $region51: #{tpu_custom_call.1} parent=47 // pred_region
        %p575 = scmp.lt.s32.totalorder %s17, 1
        %s576 = scalar_select %p575, %s17, 1
        %s577 = smul.addr %s576, 8
        %s578 = scalar_lea.vmem %s5, %s577
      $region52: #{tpu_custom_call.1} parent=47 // pred_fallthru
        _
    $region48: #{tpu_custom_call.1} parent=5 // pred_fallthru
      _
  $region6: #{tpu_custom_call.1} parent=0 // loop_footer
    %s15 = sadd.s32 1, %s11
  $region7: #{tpu_custom_call.1} parent=0 // loop_footer_branch
    %10 = sbr.rel target = $region3
  $region8: #{tpu_custom_call.1} parent=0 // loop_exit
    _

</llo_original>
